<compile_context>
chip_gen: v6e
topology: v6e:2x2x1
jax: 0.10.0
libtpu: 0.0.40
codegen_flags: <defaults>
</compile_context>

<pallas_src>
from functools import reduce

import jax
import jax.numpy as jnp
from jax.experimental import pallas as pl
from jax.experimental.pallas import tpu as pltpu
import numpy as np


# ---------------------------------------------------------------------------
# Operator construction (plain JAX glue)
# ---------------------------------------------------------------------------
def build_rz_diag(params):
    """Length-D complex diagonal of the parallel-RZ operator (f32).

    Left-fold complex Kronecker of per-qubit diagonals, matching the torch
    reduce(kronecker_complex, ...) ordering.  Cost O(n_qubit * 2**n_qubit).
    """
    params = params.astype(jnp.float32)
    n_qubit = params.shape[0]
    c = jnp.cos(params / 2)
    s = jnp.sin(params / 2)
    # per-qubit diagonal: real part [c, c], imag part [-s, s]
    g_r = jnp.stack([c, c], axis=-1)    # (n_qubit, 2)
    g_i = jnp.stack([-s, s], axis=-1)   # (n_qubit, 2)

    d_r, d_i = g_r[0], g_i[0]
    for k in range(1, n_qubit):
        a_r, a_i = d_r, d_i
        b_r, b_i = g_r[k], g_i[k]
        # complex Kronecker of diagonal vectors == flattened complex outer product
        d_r = (jnp.outer(a_r, b_r) - jnp.outer(a_i, b_i)).reshape(-1)
        d_i = (jnp.outer(a_i, b_r) + jnp.outer(a_r, b_i)).reshape(-1)
    return d_r, d_i


# Dense-operator construction, used only by the pure-JAX reference below.
def _kronecker(A, B):
    return jnp.einsum("ab,cd->acbd", A, B).reshape(
        A.shape[0] * B.shape[0], A.shape[1] * B.shape[1]
    )


def _kronecker_complex(A, B):
    A_r, A_i = A
    B_r, B_i = B
    return (
        _kronecker(A_r, B_r) - _kronecker(A_i, B_i),
        _kronecker(A_i, B_r) + _kronecker(A_r, B_i),
    )


def _build_rz_operator_dense(params):
    n_qubit = params.shape[0]
    cos = jnp.cos(params / 2).reshape(n_qubit, 1)
    sin = jnp.sin(params / 2).reshape(n_qubit, 1)
    zero = jnp.zeros_like(cos)
    real_gate = jnp.concatenate([cos, zero, zero, cos], axis=-1).reshape(n_qubit, 2, 2)
    imag_gate = jnp.concatenate([-sin, zero, zero, sin], axis=-1).reshape(n_qubit, 2, 2)
    gates = [(real_gate[k], imag_gate[k]) for k in range(n_qubit)]
    return reduce(_kronecker_complex, gates)


# ---------------------------------------------------------------------------
# Pallas kernel: elementwise complex multiply by the diagonal operator
# ---------------------------------------------------------------------------
def _diag_complex_mul_kernel(dr_ref, di_ref, xr_ref, xi_ref, or_ref, oi_ref):
    dr = dr_ref[...]                              # (1, td), f32, broadcast over rows
    di = di_ref[...]                              # (1, td), f32
    xr = xr_ref[...].astype(jnp.float32)          # (tb, td)
    xi = xi_ref[...].astype(jnp.float32)          # (tb, td)
    or_ref[...] = (xr * dr - xi * di).astype(or_ref.dtype)
    oi_ref[...] = (xr * di + xi * dr).astype(oi_ref.dtype)


def _round_down_8(n):
    return (n // 8) * 8


def _round_up_8(n):
    return ((n + 7) // 8) * 8


def _choose_tiles(B, D, itemsize, vmem_budget_bytes):
    """Pick (tb, td) so the double-buffered pipeline fits the VMEM budget."""
    # D tile: D is a power of two >= 128 here, so any power-of-two td >= 128
    # divides it evenly and is lane-aligned.
    td = min(D, 8192)
    # Per-step footprint: (2 in + 2 out) x 2 buffers x tb x td x itemsize
    #                     + 2 diag x 2 buffers x td x 4 bytes.
    while td > 128 and (8 * 8 * td * itemsize + 4 * td * 4) > vmem_budget_bytes:
        td //= 2
    diag_bytes = 4 * td * 4
    tb = (vmem_budget_bytes - diag_bytes) // (8 * td * itemsize)
    tb = max(8, min(tb, 2048))
    tb = _round_down_8(tb)

    if B <= tb:
        if D == td and B >= 16:
            # Whole batch fits in one step: split into >= 2 steps so megacore
            # (v7x's second TensorCore) gets work on the "parallel" axis.
            tb = _round_up_8((B + 1) // 2)
        else:
            tb = B  # full-extent block (allowed even when not a multiple of 8)
    return tb, td


def _pack_lane_dense(x_r, x_i, d_r, d_i, D):
    """For D < 128: repack x to (B*D/128, 128) and tile the diagonal."""
    B = x_r.shape[0]
    reps = 128 // D                     # D is a power of two < 128, so this is exact
    pad = (-B) % reps
    if pad:
        x_r = jnp.pad(x_r, ((0, pad), (0, 0)))
        x_i = jnp.pad(x_i, ((0, pad), (0, 0)))
    rows = (B + pad) // reps
    x_r = x_r.reshape(rows, 128)
    x_i = x_i.reshape(rows, 128)
    d_r = jnp.tile(d_r, reps)
    d_i = jnp.tile(d_i, reps)
    return x_r, x_i, d_r, d_i, rows


def parallel_rz_complex(x_r, x_i, params, *, vmem_budget_bytes=12 * 1024 * 1024):
    """Forward pass of ParallelRZComplex. x_r, x_i: (B, 2**n_qubit)."""
    B, D = x_r.shape
    orig_B, orig_D = B, D

    d_r, d_i = build_rz_diag(params)    # (D,), f32
    assert d_r.shape == (D,)

    # Lane-dense repack for small state dimensions (avoids masked partial stores).
    if D < 128:
        x_r, x_i, d_r, d_i, B = _pack_lane_dense(x_r, x_i, d_r, d_i, D)
        D = 128

    d_r = d_r.reshape(1, D)             # keep f32; upcast of x happens in-kernel
    d_i = d_i.reshape(1, D)

    itemsize = x_r.dtype.itemsize
    tb, td = _choose_tiles(B, D, itemsize, vmem_budget_bytes)
    grid = (pl.cdiv(B, tb), pl.cdiv(D, td))

    # Diagonal block only changes with the D-axis step (stays resident across
    # the batch axis); x/out tiles are lane-dense (tb, td).
    diag_spec = pl.BlockSpec((1, td), lambda i, j: (0, j))
    vec_spec = pl.BlockSpec((tb, td), lambda i, j: (i, j))

    cost = pl.CostEstimate(
        flops=6 * B * D,
        transcendentals=0,
        bytes_accessed=4 * B * D * itemsize + 2 * D * 4,
    )

    out_r, out_i = pl.pallas_call(
        _diag_complex_mul_kernel,
        out_shape=(
            jax.ShapeDtypeStruct((B, D), x_r.dtype),
            jax.ShapeDtypeStruct((B, D), x_r.dtype),
        ),
        grid=grid,
        in_specs=[diag_spec, diag_spec, vec_spec, vec_spec],
        out_specs=(vec_spec, vec_spec),
        compiler_params=pltpu.CompilerParams(
            dimension_semantics=("parallel", "parallel"),
            vmem_limit_bytes=32 * 1024 * 1024,
        ),
        cost_estimate=cost,
    )(d_r, d_i, x_r, x_i)

    if orig_D < 128:
        out_r = out_r.reshape(-1, orig_D)[:orig_B]
        out_i = out_i.reshape(-1, orig_D)[:orig_B]
    return out_r, out_i


# ---------------------------------------------------------------------------
# Pure-JAX reference (dense operator, mirrors the torch code exactly)
# ---------------------------------------------------------------------------
def parallel_rz_complex_ref(x_r, x_i, params):
    op_r, op_i = _build_rz_operator_dense(params)
    return (x_r @ op_r - x_i @ op_i, x_r @ op_i + x_i @ op_r)


if __name__ == "__main__":
    # (n_qubit, batch): lane-dense main path (D=128) and the D<128 packing path
    # (with a batch that needs padding).
    configs = [(7, 8), (3, 6)]

    for n_qubit, batch in configs:
        D = 2 ** n_qubit
        key = jax.random.PRNGKey(0)
        k_p, k_xr, k_xi = jax.random.split(key, 3)

        # Deterministic "parameter init": (rand * 2 - 1) * pi, matching torch init.
        params = (jax.random.uniform(k_p, (n_qubit,), dtype=jnp.float32) * 2.0 - 1.0) * np.pi

        x_r = jax.random.normal(k_xr, (batch, D), dtype=jnp.float32)
        x_i = jax.random.normal(k_xi, (batch, D), dtype=jnp.float32)

        out_r, out_i = parallel_rz_complex(x_r, x_i, params)
        out_r = jax.block_until_ready(out_r)
        out_i = jax.block_until_ready(out_i)

        ref_r, ref_i = parallel_rz_complex_ref(x_r, x_i, params)
        np.testing.assert_allclose(np.asarray(out_r), np.asarray(ref_r), rtol=1e-5, atol=1e-5)
        np.testing.assert_allclose(np.asarray(out_i), np.asarray(ref_i), rtol=1e-5, atol=1e-5)

    print("KERNEL_OK")
</pallas_src>

<mosaic_0001>
module attributes {stable_mosaic.version = 11 : i64} {
  func.func @_diag_complex_mul_kernel(%arg0: i32, %arg1: i32, %arg2: memref<1x128xf32, #tpu.memory_space<vmem>>, %arg3: memref<1x128xf32, #tpu.memory_space<vmem>>, %arg4: memref<8x128xf32, #tpu.memory_space<vmem>>, %arg5: memref<8x128xf32, #tpu.memory_space<vmem>>, %arg6: memref<8x128xf32, #tpu.memory_space<vmem>>, %arg7: memref<8x128xf32, #tpu.memory_space<vmem>>) attributes {dimension_semantics = [#tpu.dimension_semantics<parallel>, #tpu.dimension_semantics<parallel>], iteration_bounds = array<i64: 1, 1>, scalar_prefetch = 0 : i64, scratch_operands = 0 : i64, tpu.core_type = #tpu.core_type<tc>, window_params = [{transform_indices = @transform_0, window_bounds = array<i64: 1, 128>}, {transform_indices = @transform_1, window_bounds = array<i64: 1, 128>}, {transform_indices = @transform_2, window_bounds = array<i64: 8, 128>}, {transform_indices = @transform_3, window_bounds = array<i64: 8, 128>}, {transform_indices = @transform_4, window_bounds = array<i64: 8, 128>}, {transform_indices = @transform_5, window_bounds = array<i64: 8, 128>}]} {
    %c0 = arith.constant 0 : index
    %c0_0 = arith.constant 0 : index
    %0 = vector.load %arg2[%c0, %c0_0] : memref<1x128xf32, #tpu.memory_space<vmem>>, vector<1x128xf32>
    %c0_1 = arith.constant 0 : index
    %c0_2 = arith.constant 0 : index
    %1 = vector.load %arg3[%c0_1, %c0_2] : memref<1x128xf32, #tpu.memory_space<vmem>>, vector<1x128xf32>
    %c0_3 = arith.constant 0 : index
    %c0_4 = arith.constant 0 : index
    %2 = vector.load %arg4[%c0_3, %c0_4] : memref<8x128xf32, #tpu.memory_space<vmem>>, vector<8x128xf32>
    %c0_5 = arith.constant 0 : index
    %c0_6 = arith.constant 0 : index
    %3 = vector.load %arg5[%c0_5, %c0_6] : memref<8x128xf32, #tpu.memory_space<vmem>>, vector<8x128xf32>
    %4 = vector.broadcast %0 : vector<1x128xf32> to vector<8x128xf32>
    %5 = arith.mulf %2, %4 : vector<8x128xf32>
    %6 = vector.broadcast %1 : vector<1x128xf32> to vector<8x128xf32>
    %7 = arith.mulf %3, %6 : vector<8x128xf32>
    %8 = arith.subf %5, %7 : vector<8x128xf32>
    %c0_7 = arith.constant 0 : index
    %c0_8 = arith.constant 0 : index
    %9 = vector.load %arg6[%c0_7, %c0_8] : memref<8x128xf32, #tpu.memory_space<vmem>>, vector<8x128xf32>
    tpu.vector_store %arg6[%c0_7, %c0_8], %8 {strides = array<i32>} : memref<8x128xf32, #tpu.memory_space<vmem>>, vector<8x128xf32>,
    %10 = vector.broadcast %1 : vector<1x128xf32> to vector<8x128xf32>
    %11 = arith.mulf %2, %10 : vector<8x128xf32>
    %12 = vector.broadcast %0 : vector<1x128xf32> to vector<8x128xf32>
    %13 = arith.mulf %3, %12 : vector<8x128xf32>
    %14 = arith.addf %11, %13 : vector<8x128xf32>
    %c0_9 = arith.constant 0 : index
    %c0_10 = arith.constant 0 : index
    %15 = vector.load %arg7[%c0_9, %c0_10] : memref<8x128xf32, #tpu.memory_space<vmem>>, vector<8x128xf32>
    tpu.vector_store %arg7[%c0_9, %c0_10], %14 {strides = array<i32>} : memref<8x128xf32, #tpu.memory_space<vmem>>, vector<8x128xf32>,
    return
  }
  func.func @transform_0(%arg0: i32, %arg1: i32) -> (i32, i32) {
    %c0_i32 = arith.constant 0 : i32
    %c0_i32_0 = arith.constant 0 : i32
    return %c0_i32, %arg1 : i32, i32
  }
  func.func @transform_1(%arg0: i32, %arg1: i32) -> (i32, i32) {
    %c0_i32 = arith.constant 0 : i32
    %c0_i32_0 = arith.constant 0 : i32
    return %c0_i32, %arg1 : i32, i32
  }
  func.func @transform_2(%arg0: i32, %arg1: i32) -> (i32, i32) {
    %c0_i32 = arith.constant 0 : i32
    return %arg0, %arg1 : i32, i32
  }
  func.func @transform_3(%arg0: i32, %arg1: i32) -> (i32, i32) {
    %c0_i32 = arith.constant 0 : i32
    return %arg0, %arg1 : i32, i32
  }
  func.func @transform_4(%arg0: i32, %arg1: i32) -> (i32, i32) {
    %c0_i32 = arith.constant 0 : i32
    return %arg0, %arg1 : i32, i32
  }
  func.func @transform_5(%arg0: i32, %arg1: i32) -> (i32, i32) {
    %c0_i32 = arith.constant 0 : i32
    return %arg0, %arg1 : i32, i32
  }
}

</mosaic_0001>

<llo_original>
// kernel: tpu_custom_call.1
$region0: #{tpu_custom_call.1}
  #allocation0 [shape = 'u32[]', space=smem, size = 0x4, offset = 0x4, fixed_abs, tag = 'smem constant byte address 0x4 - core index']
  #allocation1 [shape = 'u32[144,128]{1,0:T(1,128)}', space=vmem, size = 0x12000, scoped, tag = 'internal scratch']
  %s0 = inlined_call_operand.hbm [shape: f32[1,128], index: 0, kind: input, shape index: {}]
  %s1 = inlined_call_operand.vmem [shape: f32[1,128], index: 1, kind: input, shape index: {}]
  %s2 = inlined_call_operand.hbm [shape: f32[8,128], index: 2, kind: input, shape index: {}]
  %s3 = inlined_call_operand.hbm [shape: f32[8,128], index: 3, kind: input, shape index: {}]
  %s4 = inlined_call_operand.hbm [shape: f32[8,128], index: 4, kind: output, shape index: {0}]
  %s5 = inlined_call_operand.hbm [shape: f32[8,128], index: 5, kind: output, shape index: {1}]
  %6 = xla_tuple %s4, %s5
  %s7 = sld [smem:[#allocation0]]
  $region46: #{tpu_custom_call.1} parent=0
    _
  %s9 = ssub.s32 1, %s7
  %s10 = scalar_select 0, %s9, %s7
  $region1: #{tpu_custom_call.1} parent=0
    #allocation2 [shape = 'u8[512]{0}', space=vmem, size = 0x400, scoped, tag = 'input window, operand 0, single buffered']
    #allocation3 [shape = 's32[1]{0}', space=sflag, size = 0x4, scoped, tag = 'scoped memory for tpu_custom_call.1']
    #allocation4 [shape = 's32[1]{0}', space=sflag, size = 0x4, scoped, tag = 'scoped memory for tpu_custom_call.1']
    #allocation5 [shape = 'u8[4096]{0}', space=vmem, size = 0x1000, scoped, tag = 'input window, operand 2, single buffered']
    #allocation6 [shape = 's32[1]{0}', space=sflag, size = 0x4, scoped, tag = 'scoped memory for tpu_custom_call.1']
    #allocation7 [shape = 'u8[4096]{0}', space=vmem, size = 0x1000, scoped, tag = 'input window, operand 3, single buffered']
    #allocation8 [shape = 'u8[4096]{0}', space=vmem, size = 0x1000, scoped, tag = 'output window, operand 0, single buffered']
    #allocation9 [shape = 'u8[4096]{0}', space=vmem, size = 0x1000, scoped, tag = 'output window, operand 1, single buffered']
    #allocation10 [shape = 's32[1]{0}', space=sflag, size = 0x4, scoped, tag = 'scoped memory for tpu_custom_call.1']
    %11 = vsyncpa [#allocation3], 0
    %12 = vsyncpa [#allocation6], 0
    %13 = vsyncpa [#allocation4], 0
    %14 = vsyncpa [#allocation10], 0
    // Predicated region
    $region2: #{tpu_custom_call.1} parent=1 // pred_check
      _
    $region3: #{tpu_custom_call.1} parent=1 // pred_check_branch
      %16 = sbr.rel (0) target = $region5
    $region4: #{tpu_custom_call.1} parent=1 // pred_region
      %s18 = ssub.s32 16, 16
      %19 = vsyncadd [#allocation3], %s18
      %s21 = sshll.u32 [#allocation2], 4
      %s22 = int_to_ptr.vmem [resolvable:$true] %s21
      %24 = dma.hbm_to_vmem [thread:$0]  %s0, 16, %s22, [#allocation3]
    $region5: #{tpu_custom_call.1} parent=1 // pred_fallthru
      _
    // Predicated region
    $region6: #{tpu_custom_call.1} parent=1 // pred_check
      _
    $region7: #{tpu_custom_call.1} parent=1 // pred_check_branch
      %26 = sbr.rel (0) target = $region9
    $region8: #{tpu_custom_call.1} parent=1 // pred_region
      _
    $region9: #{tpu_custom_call.1} parent=1 // pred_fallthru
      _
    // Predicated region
    $region10: #{tpu_custom_call.1} parent=1 // pred_check
      _
    $region11: #{tpu_custom_call.1} parent=1 // pred_check_branch
      %28 = sbr.rel (0) target = $region13
    $region12: #{tpu_custom_call.1} parent=1 // pred_region
      %s30 = ssub.s32 128, 128
      %31 = vsyncadd [#allocation6], %s30
      %s33 = sshll.u32 [#allocation5], 4
      %s34 = int_to_ptr.vmem [resolvable:$true] %s33
      %36 = dma.hbm_to_vmem [thread:$0]  %s2, 128, %s34, [#allocation6]
    $region13: #{tpu_custom_call.1} parent=1 // pred_fallthru
      _
    // Predicated region
    $region14: #{tpu_custom_call.1} parent=1 // pred_check
      _
    $region15: #{tpu_custom_call.1} parent=1 // pred_check_branch
      %38 = sbr.rel (0) target = $region17
    $region16: #{tpu_custom_call.1} parent=1 // pred_region
      %s40 = ssub.s32 128, 128
      %41 = vsyncadd [#allocation6], %s40
      %s43 = sshll.u32 [#allocation7], 4
      %s44 = int_to_ptr.vmem [resolvable:$true] %s43
      %46 = dma.hbm_to_vmem [thread:$0]  %s3, 128, %s44, [#allocation6]
    $region17: #{tpu_custom_call.1} parent=1 // pred_fallthru
      _
    // Predicated region
    $region18: #{tpu_custom_call.1} parent=1 // pred_check
      _
    $region19: #{tpu_custom_call.1} parent=1 // pred_check_branch
      %48 = sbr.rel (0) target = $region21
    $region20: #{tpu_custom_call.1} parent=1 // pred_region
      %49 = dma.done [#allocation3], 16
    $region21: #{tpu_custom_call.1} parent=1 // pred_fallthru
      _
    // Predicated region
    $region22: #{tpu_custom_call.1} parent=1 // pred_check
      _
    $region23: #{tpu_custom_call.1} parent=1 // pred_check_branch
      %51 = sbr.rel (0) target = $region25
    $region24: #{tpu_custom_call.1} parent=1 // pred_region
      %52 = dma.done [#allocation6], 128
    $region25: #{tpu_custom_call.1} parent=1 // pred_fallthru
      _
    // Predicated region
    $region26: #{tpu_custom_call.1} parent=1 // pred_check
      _
    $region27: #{tpu_custom_call.1} parent=1 // pred_check_branch
      %54 = sbr.rel (0) target = $region29
    $region28: #{tpu_custom_call.1} parent=1 // pred_region
      %55 = dma.done [#allocation6], 128
    $region29: #{tpu_custom_call.1} parent=1 // pred_fallthru
      _
    %v56 = vld [vmem:[#allocation2] sm:$0x1]
    %v57 = vld [vmem:[%s1] sm:$0x1]
    %v58 = vld [vmem:[#allocation5] sm:$0xff]
    %v59 = vld [vmem:[#allocation7] sm:$0xff]
    %v61 = vlaneseq
    %v62 = vshrl.u32 %v61, 7
    %v63 = vsub.s32 0, %v62
    %v64 = vrot.slane %v56, %v63
    %v66 = vmul.f32 %v58, %v64
    %v68 = vlaneseq
    %v69 = vshrl.u32 %v68, 7
    %v70 = vsub.s32 0, %v69
    %v71 = vrot.slane %v57, %v70
    %v73 = vmul.f32 %v59, %v71
    %v74 = vsub.f32 %v66, %v73
    %75 = vst [vmem:[#allocation8] sm:$0xff] %v74
    %v76 = vmul.f32 %v58, %v71
    %v77 = vmul.f32 %v59, %v64
    %v78 = vadd.f32 %v76, %v77
    %79 = vst [vmem:[#allocation9] sm:$0xff] %v78
    // Predicated region
    $region30: #{tpu_custom_call.1} parent=1 // pred_check
      _
    $region31: #{tpu_custom_call.1} parent=1 // pred_check_branch
      %81 = sbr.rel (0) target = $region33
    $region32: #{tpu_custom_call.1} parent=1 // pred_region
      %s83 = ssub.s32 128, 128
      %84 = vsyncadd [#allocation4], %s83
      %s86 = sshll.u32 [#allocation8], 4
      %s87 = int_to_ptr.vmem [resolvable:$true] %s86
      %89 = dma.vmem_to_hbm [thread:$0]  %s87, 128, %s4, [#allocation4]
    $region33: #{tpu_custom_call.1} parent=1 // pred_fallthru
      _
    // Predicated region
    $region34: #{tpu_custom_call.1} parent=1 // pred_check
      _
    $region35: #{tpu_custom_call.1} parent=1 // pred_check_branch
      %91 = sbr.rel (0) target = $region37
    $region36: #{tpu_custom_call.1} parent=1 // pred_region
      %s93 = ssub.s32 128, 128
      %94 = vsyncadd [#allocation10], %s93
      %s96 = sshll.u32 [#allocation9], 4
      %s97 = int_to_ptr.vmem [resolvable:$true] %s96
      %99 = dma.vmem_to_hbm [thread:$0]  %s97, 128, %s5, [#allocation10]
    $region37: #{tpu_custom_call.1} parent=1 // pred_fallthru
      _
    // Predicated region
    $region38: #{tpu_custom_call.1} parent=1 // pred_check
      _
    $region39: #{tpu_custom_call.1} parent=1 // pred_check_branch
      %101 = sbr.rel (0) target = $region41
    $region40: #{tpu_custom_call.1} parent=1 // pred_region
      %102 = dma.done [#allocation4], 128
    $region41: #{tpu_custom_call.1} parent=1 // pred_fallthru
      _
    // Predicated region
    $region42: #{tpu_custom_call.1} parent=1 // pred_check
      _
    $region43: #{tpu_custom_call.1} parent=1 // pred_check_branch
      %104 = sbr.rel (0) target = $region45
    $region44: #{tpu_custom_call.1} parent=1 // pred_region
      %105 = dma.done [#allocation10], 128
    $region45: #{tpu_custom_call.1} parent=1 // pred_fallthru
      _
    %106 = vsyncpa [#allocation3], 1
    %107 = vsyncpa [#allocation6], 1
    %108 = vsyncpa [#allocation4], 1
    %109 = vsyncpa [#allocation10], 1

</llo_original>
